<compile_context>
chip_gen: v6e
topology: v6e:2x2x1
jax: 0.10.0
libtpu: 0.0.40
codegen_flags: <defaults>
</compile_context>

<pallas_src>
import jax
import jax.numpy as jnp
from jax.experimental import pallas as pl
from jax.experimental.pallas import tpu as pltpu


def _attention_kernel(enc_ref, hproj_ref, we_ref, v_ref, o_ref):
    # enc_ref  : (S, TB, Ee) f32  encoder outputs, original [S, B, Ee] layout (no host pass)
    # hproj_ref: (TB, E)     f32  hidden[-1] @ W_h^T + b   (decoder part of the linear)
    # we_ref   : (Ee, E)     f32  encoder part of the attn weight (transposed), VMEM-resident
    # v_ref    : (1, E)      f32  v weight pre-scaled by 1/temperature, VMEM-resident
    # o_ref    : (TB, S)     f32  softmax weights over S for each batch row
    S, TB, Ee = enc_ref.shape
    E = we_ref.shape[1]

    # (S*TB, Ee) @ (Ee, E) on the MXU with f32 accumulation. The leading-dim merge is a
    # layout-preserving view when TB is a multiple of 8 (guaranteed by _pick_block_b for
    # any tiled batch); for tiny full-batch blocks it is a negligible relayout.
    x2d = enc_ref[...].reshape(S * TB, Ee)
    proj = jnp.dot(x2d, we_ref[...], preferred_element_type=jnp.float32)       # (S*TB, E)
    energy = jnp.tanh(proj.reshape(S, TB, E) + hproj_ref[...][None, :, :])     # (S, TB, E)

    # v-projection as VPU multiply + lane (XLU) reduce instead of an [E, 1] MXU matmul.
    # v is pre-scaled by 1/temperature on the host, so `scores` already includes it.
    scores = jnp.sum(energy * v_ref[...], axis=-1)                             # (S, TB)

    # One small XLU transpose so the softmax math and the output stores are lane-dense
    # over S (batch-major), then a numerically-stable exact softmax over the source axis.
    scores = jnp.transpose(scores)                                             # (TB, S)
    scores = scores - jnp.max(scores, axis=-1, keepdims=True)                  # no-op shift
    e = jnp.exp(scores)
    o_ref[...] = e / jnp.sum(e, axis=-1, keepdims=True)                        # exact divide


def _tpu_generation_defaults():
    """Per-generation VMEM limit and per-step working-set budget (bytes)."""
    try:
        kind = jax.devices()[0].device_kind.lower()
    except Exception:  # pragma: no cover - defensive; defaults are safe everywhere.
        kind = ""
    if "v7" in kind:        # 64 MiB physical VMEM, 2 TensorCores/chip
        return {"vmem_limit": 48 << 20, "block_budget": 28 << 20, "min_grid_steps": 2}
    if "v6" in kind:        # 128 MiB physical VMEM
        return {"vmem_limit": 64 << 20, "block_budget": 40 << 20, "min_grid_steps": 1}
    if "v5" in kind:        # v5e: 128 MiB physical, 16 MiB scoped default
        return {"vmem_limit": 32 << 20, "block_budget": 20 << 20, "min_grid_steps": 1}
    return {"vmem_limit": 32 << 20, "block_budget": 20 << 20, "min_grid_steps": 1}


def _pick_block_b(batch, src_len, ee, e, cfg):
    """Pick the batch tile so the per-step working set fits the generation's budget.

    Per batch row, one grid step holds roughly:
      enc block f32 (double-buffered, x2) + the x2d value (~x1) + proj/energy f32 temps
      (~x1 each in E) + small out/hproj blocks.
    A tiled batch uses a multiple-of-8 tile (BlockSpec (8,128) rule); a full-batch tile
    is always legal regardless of B.
    """
    per_row = src_len * 4 * (3 * ee + 2 * e) + src_len * 4 * 2 + e * 4 * 2
    rows = max(1, cfg["block_budget"] // per_row)
    if rows >= batch:
        tb = batch                                   # full batch in one block
    else:
        tb = min(batch, max(8, (rows // 8) * 8))     # multiple of 8 (or full batch)
    # v7x: keep at least `min_grid_steps` grid steps so both TensorCores get work.
    if cfg["min_grid_steps"] > 1 and batch >= 16 and pl.cdiv(batch, tb) < cfg["min_grid_steps"]:
        tb = max(8, ((batch // cfg["min_grid_steps"]) // 8) * 8)
    return tb


def attention_forward(hidden, encoder_outputs, w_attn, b_attn, v_w,
                      temperature=10.0, block_b=None):
    """hidden: [L, B, D]; encoder_outputs: [S, B, Ee]; returns [B, S, 1] (torch layout)."""
    S, B, Ee = encoder_outputs.shape
    D = hidden.shape[-1]
    E = w_attn.shape[0]

    # Split the nn.Linear(D+Ee, E) weight: catted features are ordered (hidden, encoder).
    w_h_t = w_attn[:, :D].T.astype(jnp.float32)            # [D, E]
    w_e_t = w_attn[:, D:].T.astype(jnp.float32)            # [Ee, E]  VMEM-resident weight

    # Decoder contribution + bias, computed once per batch row (no S-broadcast to HBM).
    hproj = hidden[-1].astype(jnp.float32) @ w_h_t + b_attn.astype(jnp.float32)[None, :]  # [B, E]

    # Fold 1/temperature into v (scale commutes through the lane-sum).
    v_scaled = (v_w.astype(jnp.float32) / float(temperature)).reshape(1, E)   # [1, E]

    cfg = _tpu_generation_defaults()
    tb = block_b if block_b is not None else _pick_block_b(B, S, Ee, E, cfg)
    grid = (pl.cdiv(B, tb),)

    out2d = pl.pallas_call(
        _attention_kernel,
        out_shape=jax.ShapeDtypeStruct((B, S), jnp.float32),
        grid_spec=pltpu.PrefetchScalarGridSpec(
            num_scalar_prefetch=0,
            grid=grid,
            in_specs=[
                # Read the original [S, B, Ee] layout directly; no wrapper transpose pass.
                pl.BlockSpec((S, tb, Ee), lambda b: (0, b, 0)),
                pl.BlockSpec((tb, E), lambda b: (b, 0)),
                # Tiny weights stay resident in VMEM for the whole grid (no per-step DMA).
                pl.BlockSpec(memory_space=pltpu.MemorySpace.VMEM),
                pl.BlockSpec(memory_space=pltpu.MemorySpace.VMEM),
            ],
            out_specs=pl.BlockSpec((tb, S), lambda b: (b, 0)),
        ),
        compiler_params=pltpu.CompilerParams(
            dimension_semantics=("parallel",),
            vmem_limit_bytes=cfg["vmem_limit"],
        ),
    )(encoder_outputs.astype(jnp.float32), hproj, w_e_t, v_scaled)

    # Lane-dense [B, S] kernel output -> [B, S, 1] to match torch's permute(1, 0, 2).
    return out2d[:, :, None]


def attention_reference(hidden, encoder_outputs, w_attn, b_attn, v_w, temperature=10.0):
    """Pure-JAX f32 replica of the torch forward for correctness checking."""
    S, B, E = encoder_outputs.shape
    D = hidden.shape[-1]
    h_rep = jnp.broadcast_to(hidden[-1][None], (S, B, D))
    catted = jnp.concatenate([h_rep, encoder_outputs], axis=2)                # [S, B, D+E]
    energy = jnp.tanh(catted @ w_attn.T + b_attn)                             # [S, B, E]
    attention = energy @ v_w.T                                                # [S, B, 1]
    e = jnp.exp(attention / temperature)
    attention = e / jnp.sum(e, axis=0, keepdims=True)                         # softmax over dim 0
    return jnp.transpose(attention, (1, 0, 2))                                # [B, S, 1]


if __name__ == "__main__":
    enc_hid_dim = 32
    dec_hid_dim = 32
    src_len = 8
    batch = 2
    n_layers = 2
    temperature = 10.0

    key = jax.random.PRNGKey(0)
    k_h, k_enc, k_w, k_b, k_v = jax.random.split(key, 5)

    # module inputs
    hidden = jax.random.normal(k_h, (n_layers, batch, dec_hid_dim), dtype=jnp.float32)
    encoder_outputs = jax.random.normal(k_enc, (src_len, batch, enc_hid_dim), dtype=jnp.float32)

    # deterministic parameter init (shapes follow nn.Linear(D+E, E) and nn.Linear(E, 1, bias=False))
    fan_in = enc_hid_dim + dec_hid_dim
    bound = 1.0 / jnp.sqrt(fan_in)
    w_attn = jax.random.uniform(k_w, (enc_hid_dim, fan_in), minval=-bound, maxval=bound,
                                dtype=jnp.float32)
    b_attn = jax.random.uniform(k_b, (enc_hid_dim,), minval=-bound, maxval=bound,
                                dtype=jnp.float32)
    bound_v = 1.0 / jnp.sqrt(enc_hid_dim)
    v_w = jax.random.uniform(k_v, (1, enc_hid_dim), minval=-bound_v, maxval=bound_v,
                             dtype=jnp.float32)

    out = attention_forward(hidden, encoder_outputs, w_attn, b_attn, v_w, temperature)
    out = jax.block_until_ready(out)

    ref = attention_reference(hidden, encoder_outputs, w_attn, b_attn, v_w, temperature)
    assert out.shape == (batch, src_len, 1), out.shape
    # All-f32 kernel with exact normalization -> tight tolerance vs the f32 reference.
    assert jnp.allclose(out, ref, atol=1e-4, rtol=1e-4), (out, ref)
    # attention weights must sum to 1 over the source axis
    assert jnp.allclose(jnp.sum(out, axis=1), 1.0, atol=1e-4), jnp.sum(out, axis=1)

    print("KERNEL_OK")
</pallas_src>

<mosaic_0001>
module attributes {stable_mosaic.version = 11 : i64} {
  func.func @_attention_kernel(%arg0: i32, %arg1: memref<8x2x32xf32, #tpu.memory_space<vmem>>, %arg2: memref<2x32xf32, #tpu.memory_space<vmem>>, %arg3: memref<32x32xf32, #tpu.memory_space<vmem>>, %arg4: memref<1x32xf32, #tpu.memory_space<vmem>>, %arg5: memref<2x8xf32, #tpu.memory_space<vmem>>) attributes {dimension_semantics = [#tpu.dimension_semantics<parallel>], iteration_bounds = array<i64: 1>, scalar_prefetch = 0 : i64, scratch_operands = 0 : i64, tpu.core_type = #tpu.core_type<tc>, window_params = [{transform_indices = @transform_0, window_bounds = array<i64: 8, 2, 32>}, {transform_indices = @transform_1, window_bounds = array<i64: 2, 32>}, {pipeline_mode = #tpu.pipeline_mode<synchronous>, transform_indices = @transform_2, window_bounds = array<i64: 32, 32>}, {pipeline_mode = #tpu.pipeline_mode<synchronous>, transform_indices = @transform_3, window_bounds = array<i64: 1, 32>}, {transform_indices = @transform_4, window_bounds = array<i64: 2, 8>}]} {
    %c0 = arith.constant 0 : index
    %c0_0 = arith.constant 0 : index
    %c0_1 = arith.constant 0 : index
    %0 = vector.load %arg1[%c0, %c0_0, %c0_1] : memref<8x2x32xf32, #tpu.memory_space<vmem>>, vector<8x2x32xf32>
    %1 = vector.shape_cast %0 : vector<8x2x32xf32> to vector<16x32xf32>
    %c0_2 = arith.constant 0 : index
    %c0_3 = arith.constant 0 : index
    %2 = vector.load %arg3[%c0_2, %c0_3] : memref<32x32xf32, #tpu.memory_space<vmem>>, vector<32x32xf32>
    %cst = arith.constant dense<0.000000e+00> : vector<16x32xf32>
    %3 = tpu.matmul %1, %2, %cst {dimension_numbers = #tpu.dot_dimension_numbers<[1], [0], [0], [1], [0, 0, 1, 1], [], []>} : vector<16x32xf32>, vector<32x32xf32>, vector<16x32xf32> -> vector<16x32xf32>
    %4 = vector.shape_cast %3 : vector<16x32xf32> to vector<8x2x32xf32>
    %c0_4 = arith.constant 0 : index
    %c0_5 = arith.constant 0 : index
    %5 = vector.load %arg2[%c0_4, %c0_5] : memref<2x32xf32, #tpu.memory_space<vmem>>, vector<2x32xf32>
    %6 = vector.shape_cast %5 : vector<2x32xf32> to vector<1x2x32xf32>
    %7 = vector.broadcast %6 : vector<1x2x32xf32> to vector<8x2x32xf32>
    %8 = arith.addf %4, %7 : vector<8x2x32xf32>
    %9 = math.tanh %8 : vector<8x2x32xf32>
    %c0_6 = arith.constant 0 : index
    %c0_7 = arith.constant 0 : index
    %10 = vector.load %arg4[%c0_6, %c0_7] : memref<1x32xf32, #tpu.memory_space<vmem>>, vector<1x32xf32>
    %11 = vector.shape_cast %10 : vector<1x32xf32> to vector<1x1x32xf32>
    %12 = vector.broadcast %11 : vector<1x1x32xf32> to vector<8x2x32xf32>
    %13 = arith.mulf %9, %12 : vector<8x2x32xf32>
    %cst_8 = arith.constant dense<0.000000e+00> : vector<8x2xf32>
    %14 = vector.multi_reduction <add>, %13, %cst_8 [2] : vector<8x2x32xf32> to vector<8x2xf32>
    %15 = tpu.transpose %14, [1, 0] : vector<8x2xf32> -> vector<2x8xf32>
    %cst_9 = arith.constant dense<0xFF800000> : vector<2xf32>
    %16 = vector.multi_reduction <maximumf>, %15, %cst_9 [1] : vector<2x8xf32> to vector<2xf32>
    %17 = vector.shape_cast %16 : vector<2xf32> to vector<2x1xf32>
    %18 = vector.broadcast %17 : vector<2x1xf32> to vector<2x8xf32>
    %19 = arith.subf %15, %18 : vector<2x8xf32>
    %20 = math.exp %19 : vector<2x8xf32>
    %cst_10 = arith.constant dense<0.000000e+00> : vector<2xf32>
    %21 = vector.multi_reduction <add>, %20, %cst_10 [1] : vector<2x8xf32> to vector<2xf32>
    %22 = vector.shape_cast %21 : vector<2xf32> to vector<2x1xf32>
    %23 = vector.broadcast %22 : vector<2x1xf32> to vector<2x8xf32>
    %24 = arith.divf %20, %23 : vector<2x8xf32>
    %c0_11 = arith.constant 0 : index
    %c0_12 = arith.constant 0 : index
    %25 = vector.load %arg5[%c0_11, %c0_12] : memref<2x8xf32, #tpu.memory_space<vmem>>, vector<2x8xf32>
    tpu.vector_store %arg5[%c0_11, %c0_12], %24 {strides = array<i32>} : memref<2x8xf32, #tpu.memory_space<vmem>>, vector<2x8xf32>,
    return
  }
  func.func @transform_0(%arg0: i32) -> (i32, i32, i32) {
    %c0_i32 = arith.constant 0 : i32
    %c0_i32_0 = arith.constant 0 : i32
    %c0_i32_1 = arith.constant 0 : i32
    return %c0_i32, %arg0, %c0_i32_0 : i32, i32, i32
  }
  func.func @transform_1(%arg0: i32) -> (i32, i32) {
    %c0_i32 = arith.constant 0 : i32
    %c0_i32_0 = arith.constant 0 : i32
    return %arg0, %c0_i32 : i32, i32
  }
  func.func @transform_2(%arg0: i32) -> (i32, i32) {
    %c0_i32 = arith.constant 0 : i32
    %c0_i32_0 = arith.constant 0 : i32
    %c0_i32_1 = arith.constant 0 : i32
    return %c0_i32, %c0_i32_0 : i32, i32
  }
  func.func @transform_3(%arg0: i32) -> (i32, i32) {
    %c0_i32 = arith.constant 0 : i32
    %c0_i32_0 = arith.constant 0 : i32
    %c0_i32_1 = arith.constant 0 : i32
    return %c0_i32, %c0_i32_0 : i32, i32
  }
  func.func @transform_4(%arg0: i32) -> (i32, i32) {
    %c0_i32 = arith.constant 0 : i32
    %c0_i32_0 = arith.constant 0 : i32
    return %arg0, %c0_i32 : i32, i32
  }
}

</mosaic_0001>

<llo_original>
// kernel: tpu_custom_call.1
$region0: #{tpu_custom_call.1}
  #allocation0 [shape = 'u32[]', space=smem, size = 0x4, offset = 0x4, fixed_abs, tag = 'smem constant byte address 0x4 - core index']
  #allocation1 [shape = 'u32[144,128]{1,0:T(1,128)}', space=vmem, size = 0x12000, scoped, tag = 'internal scratch']
  %s0 = inlined_call_operand.hbm [shape: f32[8,2,32], index: 0, kind: input, shape index: {}]
  %s1 = inlined_call_operand.hbm [shape: f32[2,32], index: 1, kind: input, shape index: {}]
  %s2 = inlined_call_operand.hbm [shape: f32[32,32], index: 2, kind: input, shape index: {}]
  %s3 = inlined_call_operand.vmem [shape: f32[1,32], index: 3, kind: input, shape index: {}]
  %s4 = inlined_call_operand.hbm [shape: f32[2,8], index: 4, kind: output, shape index: {}]
  %s5 = sld [smem:[#allocation0]]
  $region38: #{tpu_custom_call.1} parent=0
    _
  %s7 = ssub.s32 1, %s5
  %s8 = scalar_select 0, %s7, %s5
  $region1: #{tpu_custom_call.1} parent=0
    #allocation2 [shape = 'u8[8192]{0}', space=vmem, size = 0x2000, scoped, tag = 'input window, operand 0, single buffered']
    #allocation3 [shape = 's32[1]{0}', space=sflag, size = 0x4, scoped, tag = 'scoped memory for tpu_custom_call.1']
    #allocation4 [shape = 's32[1]{0}', space=sflag, size = 0x4, scoped, tag = 'scoped memory for tpu_custom_call.1']
    #allocation5 [shape = 'u8[1024]{0}', space=vmem, size = 0x400, scoped, tag = 'input window, operand 1, single buffered']
    #allocation6 [shape = 's32[1]{0}', space=sflag, size = 0x4, scoped, tag = 'scoped memory for tpu_custom_call.1']
    #allocation7 [shape = 'u8[16384]{0}', space=vmem, size = 0x4000, scoped, tag = 'input window, operand 2, single buffered']
    #allocation8 [shape = 'u8[1024]{0}', space=vmem, size = 0x400, scoped, tag = 'output window, operand 0, single buffered']
    %9 = vsyncpa [#allocation3], 0
    %10 = vsyncpa [#allocation6], 0
    %11 = vsyncpa [#allocation4], 0
    // Predicated region
    $region2: #{tpu_custom_call.1} parent=1 // pred_check
      _
    $region3: #{tpu_custom_call.1} parent=1 // pred_check_branch
      %13 = sbr.rel (0) target = $region5
    $region4: #{tpu_custom_call.1} parent=1 // pred_region
      %s15 = ssub.s32 256, 256
      %16 = vsyncadd [#allocation3], %s15
      %s17 = sshll.u32 [#allocation2], 4
      %s18 = int_to_ptr.vmem [resolvable:$true] %s17
      %23 = dma.hbm_to_vmem [thread:$0]  %s0, 256, %s18, [#allocation3], 32, 32, 2
    $region5: #{tpu_custom_call.1} parent=1 // pred_fallthru
      _
    // Predicated region
    $region6: #{tpu_custom_call.1} parent=1 // pred_check
      _
    $region7: #{tpu_custom_call.1} parent=1 // pred_check_branch
      %25 = sbr.rel (0) target = $region9
    $region8: #{tpu_custom_call.1} parent=1 // pred_region
      %s27 = ssub.s32 32, 32
      %28 = vsyncadd [#allocation6], %s27
      %s30 = sshll.u32 [#allocation5], 4
      %s31 = int_to_ptr.vmem [resolvable:$true] %s30
      %33 = dma.hbm_to_vmem [thread:$0]  %s1, 32, %s31, [#allocation6]
    $region9: #{tpu_custom_call.1} parent=1 // pred_fallthru
      _
    // Predicated region
    $region10: #{tpu_custom_call.1} parent=1 // pred_check
      _
    $region11: #{tpu_custom_call.1} parent=1 // pred_check_branch
      %35 = sbr.rel (0) target = $region13
    $region12: #{tpu_custom_call.1} parent=1 // pred_region
      %s37 = ssub.s32 512, 512
      %38 = vsyncadd [#allocation6], %s37
      %s39 = sshll.u32 [#allocation7], 4
      %s40 = int_to_ptr.vmem [resolvable:$true] %s39
      %45 = dma.hbm_to_vmem [thread:$0]  %s2, 512, %s40, [#allocation6], 128, 128, 8
    $region13: #{tpu_custom_call.1} parent=1 // pred_fallthru
      _
    // Predicated region
    $region14: #{tpu_custom_call.1} parent=1 // pred_check
      _
    $region15: #{tpu_custom_call.1} parent=1 // pred_check_branch
      %47 = sbr.rel (0) target = $region17
    $region16: #{tpu_custom_call.1} parent=1 // pred_region
      _
    $region17: #{tpu_custom_call.1} parent=1 // pred_fallthru
      _
    // Predicated region
    $region18: #{tpu_custom_call.1} parent=1 // pred_check
      _
    $region19: #{tpu_custom_call.1} parent=1 // pred_check_branch
      %49 = sbr.rel (0) target = $region21
    $region20: #{tpu_custom_call.1} parent=1 // pred_region
      %50 = dma.done [#allocation3], 256
    $region21: #{tpu_custom_call.1} parent=1 // pred_fallthru
      _
    // Predicated region
    $region22: #{tpu_custom_call.1} parent=1 // pred_check
      _
    $region23: #{tpu_custom_call.1} parent=1 // pred_check_branch
      %52 = sbr.rel (0) target = $region25
    $region24: #{tpu_custom_call.1} parent=1 // pred_region
      %53 = dma.done [#allocation6], 32
    $region25: #{tpu_custom_call.1} parent=1 // pred_fallthru
      _
    // Predicated region
    $region26: #{tpu_custom_call.1} parent=1 // pred_check
      _
    $region27: #{tpu_custom_call.1} parent=1 // pred_check_branch
      %55 = sbr.rel (0) target = $region29
    $region28: #{tpu_custom_call.1} parent=1 // pred_region
      %56 = dma.done [#allocation6], 512
    $region29: #{tpu_custom_call.1} parent=1 // pred_fallthru
      _
    %v57 = vld [vmem:[#allocation2] sm:$0x3]
    %v58 = vld [vmem:[#allocation2 + $0x2] sm:$0x3]
    %v59 = vld [vmem:[#allocation2 + $0x4] sm:$0x3]
    %v60 = vld [vmem:[#allocation2 + $0x6] sm:$0x3]
    %v61 = vld [vmem:[#allocation2 + $0x8] sm:$0x3]
    %v62 = vld [vmem:[#allocation2 + $0xa] sm:$0x3]
    %v63 = vld [vmem:[#allocation2 + $0xc] sm:$0x3]
    %v64 = vld [vmem:[#allocation2 + $0xe] sm:$0x3]
    %v65 = vld [vmem:[#allocation7] sm:$0xff]
    %v66 = vld [vmem:[#allocation7 + $0x8] sm:$0xff]
    %v67 = vld [vmem:[#allocation7 + $0x10] sm:$0xff]
    %v68 = vld [vmem:[#allocation7 + $0x18] sm:$0xff]
    %v77 = vcombine.low %v57, %v58
    %v78 = vcombine.low %v59, %v60
    %v80 = vunpack.c.l.s4 1983009808
    %v81 = vunpack.c.0.s8 %v80
    %v82 = vlaneseq
    %v83 = vshrl.u32 %v82, 7
    %v84 = vsub.s32 %v81, %v83
    %v85 = vrot.slane %v77, %v84
    %v87 = vunpack.c.l.s4 1983009808
    %v88 = vunpack.c.0.s8 %v87
    %v89 = vlaneseq
    %v90 = vshrl.u32 %v89, 7
    %v91 = vsub.s32 %v88, %v90
    %v92 = vrot.slane %v78, %v91
    %v93 = vcombine.low %v85, %v92
    %v94 = vcombine.low %v61, %v62
    %v95 = vcombine.low %v63, %v64
    %v97 = vunpack.c.l.s4 1983009808
    %v98 = vunpack.c.0.s8 %v97
    %v99 = vlaneseq
    %v100 = vshrl.u32 %v99, 7
    %v101 = vsub.s32 %v98, %v100
    %v102 = vrot.slane %v94, %v101
    %v104 = vunpack.c.l.s4 1983009808
    %v105 = vunpack.c.0.s8 %v104
    %v106 = vlaneseq
    %v107 = vshrl.u32 %v106, 7
    %v108 = vsub.s32 %v105, %v107
    %v109 = vrot.slane %v95, %v108
    %v110 = vcombine.low %v102, %v109
    %vm111 = vcmask 261120
    %v112 = vsel %vm111, %v93, 0
    %v114 = vsel %vm111, %v110, 0
    %116 = vmatprep.subr.mxu0 0.0
    %117 = vmatpush1.msra.mxu0 0.0
    %118 = vmatprep.subr.mxu0 0.0
    %119 = vmatpush1.msra.mxu0 0.0
    %120 = vmatprep.subr.mxu0 0.0
    %121 = vmatpush1.msra.mxu0 0.0
    %122 = vmatprep.subr.mxu0 0.0
    %123 = vmatpush1.msra.mxu0 0.0
    %124 = vmatprep.subr.mxu0 0.0
    %125 = vmatpush1.msra.mxu0 0.0
    %126 = vmatprep.subr.mxu0 0.0
    %127 = vmatpush1.msra.mxu0 0.0
    %128 = vmatprep.subr.mxu0 0.0
    %129 = vmatpush1.msra.mxu0 0.0
    %130 = vmatprep.subr.mxu0 0.0
    %131 = vmatpush1.msra.mxu0 0.0
    %132 = vmatprep.subr.mxu0 0.0
    %133 = vmatpush1.msra.mxu0 0.0
    %134 = vmatprep.subr.mxu0 0.0
    %135 = vmatpush1.msra.mxu0 0.0
    %136 = vmatprep.subr.mxu0 0.0
    %137 = vmatpush1.msra.mxu0 0.0
    %138 = vmatprep.subr.mxu0 0.0
    %139 = vmatpush1.msra.mxu0 0.0
    %140 = vmatprep.subr.mxu0 0.0
    %141 = vmatpush1.msra.mxu0 %v68
    %142 = vmatprep.subr.mxu0 0.0
    %143 = vmatpush1.msra.mxu0 %v67
    %144 = vmatprep.subr.mxu0 0.0
    %145 = vmatpush1.msra.mxu0 %v66
    %146 = vmatprep.subr.mxu0 0.0
    %147 = vmatpush1.msra.mxu0 %v65
    %148 = vmatprep.subr.mxu0 0.0
    %149 = vmatpush2.msra.mxu0 0.0
    %150 = vmatprep.subr.mxu0 0.0
    %151 = vmatpush2.msra.mxu0 0.0
    %152 = vmatprep.subr.mxu0 0.0
    %153 = vmatpush2.msra.mxu0 0.0
    %154 = vmatprep.subr.mxu0 0.0
    %155 = vmatpush2.msra.mxu0 0.0
    %156 = vmatprep.subr.mxu0 0.0
    %157 = vmatpush2.msra.mxu0 0.0
    %158 = vmatprep.subr.mxu0 0.0
    %159 = vmatpush2.msra.mxu0 0.0
    %160 = vmatprep.subr.mxu0 0.0
    %161 = vmatpush2.msra.mxu0 0.0
    %162 = vmatprep.subr.mxu0 0.0
    %163 = vmatpush2.msra.mxu0 0.0
    %164 = vmatprep.subr.mxu0 0.0
    %165 = vmatpush2.msra.mxu0 0.0
    %166 = vmatprep.subr.mxu0 0.0
    %167 = vmatpush2.msra.mxu0 0.0
    %168 = vmatprep.subr.mxu0 0.0
    %169 = vmatpush2.msra.mxu0 0.0
    %170 = vmatprep.subr.mxu0 0.0
    %171 = vmatpush2.msra.mxu0 0.0
    %172 = vmatprep.subr.mxu0 0.0
    %173 = vmatpush2.msra.mxu0 0.0
    %174 = vmatprep.subr.mxu0 0.0
    %175 = vmatpush2.msra.mxu0 0.0
    %176 = vmatprep.subr.mxu0 0.0
    %177 = vmatpush2.msra.mxu0 0.0
    %178 = vmatprep.subr.mxu0 0.0
    %179 = vmatpush2.msra.mxu0 0.0
    %180 = vmatprep.mubr.f32.mxu0 0.0
    %181 = vmatmul.mubr.f32.gmra.mxu0 %v112
    %v182 = vpop.f32.mrf.mxu0
    %v183 = vadd.f32 0.0, %v182
    %v184 = vpop.f32.mrf.mxu0
    %185 = vmatprep.mubr.f32.mxu0 0.0
    %186 = vmatmul.mubr.f32.gmra.mxu0 %v114
    %v187 = vpop.f32.mrf.mxu0
    %v188 = vadd.f32 0.0, %v187
    %v189 = vpop.f32.mrf.mxu0
    %190 = vdwg.mxu0
    %v193 = vcombine.high %v183, %v183
    %v195 = vunpack.c.l.s4 1983009808
    %v196 = vunpack.c.0.s8 %v195
    %v197 = vlaneseq
    %v198 = vshrl.u32 %v197, 7
    %v199 = vsub.s32 %v196, %v198
    %v200 = vrot.slane %v183, %v199
    %v202 = vunpack.c.l.s4 1983009808
    %v203 = vunpack.c.0.s8 %v202
    %v204 = vlaneseq
    %v205 = vshrl.u32 %v204, 7
    %v206 = vsub.s32 %v203, %v205
    %v207 = vrot.slane %v193, %v206
    %v208 = vcombine.high %v200, %v200
    %v209 = vcombine.high %v207, %v207
    %v210 = vcombine.high %v188, %v188
    %v212 = vunpack.c.l.s4 1983009808
    %v213 = vunpack.c.0.s8 %v212
    %v214 = vlaneseq
    %v215 = vshrl.u32 %v214, 7
    %v216 = vsub.s32 %v213, %v215
    %v217 = vrot.slane %v188, %v216
    %v219 = vunpack.c.l.s4 1983009808
    %v220 = vunpack.c.0.s8 %v219
    %v221 = vlaneseq
    %v222 = vshrl.u32 %v221, 7
    %v223 = vsub.s32 %v220, %v222
    %v224 = vrot.slane %v210, %v223
    %v225 = vcombine.high %v217, %v217
    %v226 = vcombine.high %v224, %v224
    %v235 = vld [vmem:[#allocation5] sm:$0x3]
    %v236 = vadd.f32 %v200, %v235
    %v237 = vadd.f32 %v208, %v235
    %v238 = vadd.f32 %v207, %v235
    %v239 = vadd.f32 %v209, %v235
    %v240 = vadd.f32 %v217, %v235
    %v241 = vadd.f32 %v225, %v235
    %v242 = vadd.f32 %v224, %v235
    %v243 = vadd.f32 %v226, %v235
    %v244 = vtanh.pop %v236
    %v245 = vtanh.pop %v237
    %v246 = vtanh.pop %v238
    %v247 = vtanh.pop %v239
    %v248 = vtanh.pop %v240
    %v249 = vtanh.pop %v241
    %v250 = vtanh.pop %v242
    %v251 = vtanh.pop %v243
    %v252 = vld [vmem:[%s3] sm:$0x1]
    %v254 = vlaneseq
    %v255 = vshrl.u32 %v254, 7
    %v256 = vsub.s32 0, %v255
    %v257 = vrot.slane %v252, %v256
    %v259 = vmul.f32 %v244, %v257
    %v260 = vmul.f32 %v245, %v257
    %v261 = vmul.f32 %v246, %v257
    %v262 = vmul.f32 %v247, %v257
    %v263 = vmul.f32 %v248, %v257
    %v264 = vmul.f32 %v249, %v257
    %v265 = vmul.f32 %v250, %v257
    %v266 = vmul.f32 %v251, %v257
    %vm267 = vcmask 254976
    %v268 = vsel %vm267, %v259, 0.0
    %269 = vadd.xlane.f32.xlu0 %v268
    %v270 = vpop.xlane.xlu0 %269
    %v271 = vsel %vm267, %v260, 0.0
    %272 = vadd.xlane.f32.xlu0 %v271
    %v273 = vpop.xlane.xlu0 %272
    %v274 = vsel %vm267, %v261, 0.0
    %275 = vadd.xlane.f32.xlu0 %v274
    %v276 = vpop.xlane.xlu0 %275
    %v277 = vsel %vm267, %v262, 0.0
    %278 = vadd.xlane.f32.xlu0 %v277
    %v279 = vpop.xlane.xlu0 %278
    %v280 = vsel %vm267, %v263, 0.0
    %281 = vadd.xlane.f32.xlu0 %v280
    %v282 = vpop.xlane.xlu0 %281
    %v283 = vsel %vm267, %v264, 0.0
    %284 = vadd.xlane.f32.xlu0 %v283
    %v285 = vpop.xlane.xlu0 %284
    %v286 = vsel %vm267, %v265, 0.0
    %287 = vadd.xlane.f32.xlu0 %v286
    %v288 = vpop.xlane.xlu0 %287
    %v289 = vsel %vm267, %v266, 0.0
    %290 = vadd.xlane.f32.xlu0 %v289
    %v291 = vpop.xlane.xlu0 %290
    %v300 = vlaneseq
    %v301 = vand.u32 %v300, 127
    %v302 = vlaneseq
    %v303 = vshrl.u32 %v302, 7
    %v304 = vsub.s32 %v301, %v303
    %v305 = vrot.slane %v270, %v304
    %v306 = vlaneseq
    %v307 = vshrl.u32 %v306, 7
    %v308 = vsub.s32 %v301, %v307
    %v309 = vrot.slane %v273, %v308
    %v310 = vlaneseq
    %v311 = vshrl.u32 %v310, 7
    %v312 = vsub.s32 %v301, %v311
    %v313 = vrot.slane %v276, %v312
    %v314 = vlaneseq
    %v315 = vshrl.u32 %v314, 7
    %v316 = vsub.s32 %v301, %v315
    %v317 = vrot.slane %v279, %v316
    %v318 = vlaneseq
    %v319 = vshrl.u32 %v318, 7
    %v320 = vsub.s32 %v301, %v319
    %v321 = vrot.slane %v282, %v320
    %v322 = vlaneseq
    %v323 = vshrl.u32 %v322, 7
    %v324 = vsub.s32 %v301, %v323
    %v325 = vrot.slane %v285, %v324
    %v326 = vlaneseq
    %v327 = vshrl.u32 %v326, 7
    %v328 = vsub.s32 %v301, %v327
    %v329 = vrot.slane %v288, %v328
    %v330 = vlaneseq
    %v331 = vshrl.u32 %v330, 7
    %v332 = vsub.s32 %v301, %v331
    %v333 = vrot.slane %v291, %v332
    %vm334 = vcmask 1041409
    %v335 = vsel %vm334, %v309, %v305
    %vm336 = vcmask 1042434
    %v337 = vsel %vm336, %v313, %v335
    %vm338 = vcmask 1043459
    %v339 = vsel %vm338, %v317, %v337
    %vm340 = vcmask 1044484
    %v341 = vsel %vm340, %v321, %v339
    %vm342 = vcmask 1045509
    %v343 = vsel %vm342, %v325, %v341
    %vm344 = vcmask 1046534
    %v345 = vsel %vm344, %v329, %v343
    %vm346 = vcmask 1047559
    %v347 = vsel %vm346, %v333, %v345
    %349 = vxpose.xlu0.b32.start [1/16] %v347, 128
    %350 = vxpose.xlu0.b32.cont [2/16] 0.0, 128
    %351 = vxpose.xlu0.b32.cont [3/16] 0.0, 128
    %352 = vxpose.xlu0.b32.cont [4/16] 0.0, 128
    %353 = vxpose.xlu0.b32.cont [5/16] 0.0, 128
    %354 = vxpose.xlu0.b32.cont [6/16] 0.0, 128
    %355 = vxpose.xlu0.b32.cont [7/16] 0.0, 128
    %356 = vxpose.xlu0.b32.cont [8/16] 0.0, 128
    %357 = vxpose.xlu0.b32.cont [9/16] 0.0, 128
    %358 = vxpose.xlu0.b32.cont [10/16] 0.0, 128
    %359 = vxpose.xlu0.b32.cont [11/16] 0.0, 128
    %360 = vxpose.xlu0.b32.cont [12/16] 0.0, 128
    %361 = vxpose.xlu0.b32.cont [13/16] 0.0, 128
    %362 = vxpose.xlu0.b32.cont [14/16] 0.0, 128
    %363 = vxpose.xlu0.b32.cont [15/16] 0.0, 128
    %364 = vxpose.xlu0.b32.end [16/16] 0.0, 128
    %v365 = vpop.trf.xlu0
    %v366 = vpop.trf.xlu0
    %v367 = vpop.trf.xlu0
    %v368 = vpop.trf.xlu0
    %v369 = vpop.trf.xlu0
    %v370 = vpop.trf.xlu0
    %v371 = vpop.trf.xlu0
    %v372 = vpop.trf.xlu0
    %v373 = vpop.trf.xlu0
    %v374 = vpop.trf.xlu0
    %v375 = vpop.trf.xlu0
    %v376 = vpop.trf.xlu0
    %v377 = vpop.trf.xlu0
    %v378 = vpop.trf.xlu0
    %v379 = vpop.trf.xlu0
    %v380 = vpop.trf.xlu0
    %vm381 = vcmask 58368
    %v382 = vsel %vm381, %v365, -inf
    %383 = vmax.xlane.f32.xlu0 %v382
    %v384 = vpop.xlane.xlu0 %383
    %v385 = vsub.f32 %v365, %v384
    %v386 = vmul.f32 %v385, 1.442695
    %v387 = vpow.pop %v386
    %v388 = vsel %vm381, %v387, 0.0
    %389 = vadd.xlane.f32.xlu0 %v388
    %v390 = vpop.xlane.xlu0 %389
    %v391 = vrcp.pop %v390
    %v392 = vmul.f32 %v387, %v391
    %393 = vst.msk [vmem:[#allocation8] sm:$0x3] %vm381, %v392
    // Predicated region
    $region30: #{tpu_custom_call.1} parent=1 // pred_check
      _
    $region31: #{tpu_custom_call.1} parent=1 // pred_check_branch
      %395 = sbr.rel (0) target = $region33
    $region32: #{tpu_custom_call.1} parent=1 // pred_region
      %s397 = ssub.s32 32, 32
      %398 = vsyncadd [#allocation4], %s397
      %s400 = sshll.u32 [#allocation8], 4
      %s401 = int_to_ptr.vmem [resolvable:$true] %s400
      %403 = dma.vmem_to_hbm [thread:$0]  %s401, 32, %s4, [#allocation4]
    $region33: #{tpu_custom_call.1} parent=1 // pred_fallthru
      _
    // Predicated region
    $region34: #{tpu_custom_call.1} parent=1 // pred_check
      _
    $region35: #{tpu_custom_call.1} parent=1 // pred_check_branch
      %405 = sbr.rel (0) target = $region37
    $region36: #{tpu_custom_call.1} parent=1 // pred_region
      %406 = dma.done [#allocation4], 32
    $region37: #{tpu_custom_call.1} parent=1 // pred_fallthru
      _
    %407 = vsyncpa [#allocation3], 1
    %408 = vsyncpa [#allocation6], 1
    %409 = vsyncpa [#allocation4], 1

</llo_original>
